<compile_context>
chip_gen: v7x
topology: tpu7x:2x2x1
jax: 0.10.0
libtpu: 0.0.40
codegen_flags: <defaults>
</compile_context>

<pallas_src>
import jax
import jax.numpy as jnp
from jax.experimental import pallas as pl
from jax.experimental.pallas import tpu as pltpu


def _uop_attention_kernel(x1_ref, x2_ref, mask_ref,
                          wa_ref, ab_ref, wt_ref, wp_ref, bp_ref,
                          pooled_ref, weights_ref):
    # x1_ref:   (TB, D1)       x2_ref: (TB, S, D2)     mask_ref: (TB, S)
    # wa_ref:   (D1, P)        ab_ref: (1, P)  (= b_attr + b_text folded)
    # wt_ref:   (D2, P)        wp_ref: (1, P)  bp_ref:  (1,) f32 in SMEM
    # pooled_ref: (TB, D2)     weights_ref: (TB, S)
    tb, s, d2 = x2_ref.shape
    p = wt_ref.shape[1]

    x1 = x1_ref[...]                               # (TB, D1)
    x2 = x2_ref[...]                               # (TB, S, D2)

    # pre_pooling_linear_attr(input_1) (+ both pre-tanh biases folded): (TB, P)
    a = jnp.dot(x1, wa_ref[...], preferred_element_type=jnp.float32) + ab_ref[...]

    # pre_pooling_linear_text(input_2) as ONE (TB*S, D2) @ (D2, P) MXU matmul.
    t = jnp.dot(x2.reshape(tb * s, d2), wt_ref[...],
                preferred_element_type=jnp.float32)
    t = t.reshape(tb, s, p)                        # (TB, S, P)

    # tanh(attr.unsqueeze(1) + text)
    h = jnp.tanh(a[:, None, :] + t)                # (TB, S, P)

    # pooling_linear(h).squeeze(2): lane-reduce over P (XLU); scores stay
    # lane-dense with S on the lane axis.  bp is a scalar read from SMEM.
    scores = jnp.sum(h * wp_ref[...], axis=-1) + bp_ref[0]      # (TB, S)

    # masked_fill(mask == 0, -1e9).  Binary masks only (exact float compare).
    scores = jnp.where(mask_ref[...] == 0.0, jnp.float32(-1e9), scores)

    # Softmax over the sequence (lane) axis; reciprocal on the EUP.
    m = jnp.max(scores, axis=-1, keepdims=True)    # (TB, 1)
    e = jnp.exp(scores - m)                        # (TB, S)
    inv = pl.reciprocal(jnp.sum(e, axis=-1, keepdims=True), approx=True)
    probs = e * inv                                # (TB, S)
    weights_ref[...] = probs

    # (input_2 * weights.unsqueeze(2)).sum(dim=1) on the MXU:
    # (TB, 1, S) @ (TB, S, D2) -> (TB, 1, D2)
    pooled = jnp.einsum('bqs,bsd->bqd', probs[:, None, :], x2,
                        preferred_element_type=jnp.float32)
    pooled_ref[...] = pooled[:, 0, :]              # (TB, D2)


def uop_attention(input_1, input_2, params, mask=None, batch_tile=None):
    """Pallas implementation of UoPAttention.forward.

    input_1: (B, D1) float32
    input_2: (B, S, D2) float32
    mask:    optional (B, S); positions where mask == 0 get -1e9 before softmax.
             Only binary masks are supported (exact float equality with 0).
    Returns: (pooled (B, D2), weights (B, S))
    """
    wa, ba, wt, bt, wp, bp = params
    B, D1 = input_1.shape
    _, S, D2 = input_2.shape
    P = wa.shape[1]

    if mask is None:
        mask = jnp.ones((B, S), dtype=jnp.float32)
    mask = mask.astype(jnp.float32)

    ab = (ba + bt).reshape(1, P)              # fold the two pre-tanh biases
    bp_s = bp.reshape(1).astype(jnp.float32)  # scalar pooling bias -> SMEM

    # Whole batch in one grid step at these sizes; batch_tile is available for
    # very large B (each block's trailing dims stay the full array dims).
    tb = B if batch_tile is None else batch_tile
    assert B % tb == 0, "batch_tile must divide the batch size"
    grid = (B // tb,)

    shared = lambda shape: pl.BlockSpec(shape, lambda b: (0, 0))

    pooled, weights = pl.pallas_call(
        _uop_attention_kernel,
        grid=grid,
        in_specs=[
            pl.BlockSpec((tb, D1), lambda b: (b, 0)),           # input_1
            pl.BlockSpec((tb, S, D2), lambda b: (b, 0, 0)),     # input_2
            pl.BlockSpec((tb, S), lambda b: (b, 0)),            # mask
            shared((D1, P)),                                    # W_attr^T
            shared((1, P)),                                     # b_attr + b_text
            shared((D2, P)),                                    # W_text^T
            shared((1, P)),                                     # w_pool (row)
            pl.BlockSpec(memory_space=pltpu.MemorySpace.SMEM),  # b_pool scalar
        ],
        out_specs=(
            pl.BlockSpec((tb, D2), lambda b: (b, 0)),           # pooled
            pl.BlockSpec((tb, S), lambda b: (b, 0)),            # attention weights
        ),
        out_shape=(
            jax.ShapeDtypeStruct((B, D2), jnp.float32),
            jax.ShapeDtypeStruct((B, S), jnp.float32),
        ),
        compiler_params=pltpu.CompilerParams(
            dimension_semantics=("parallel",)),
    )(input_1, input_2, mask, wa, ab, wt, wp, bp_s)

    return pooled, weights


def init_params(key, input1_dim, input2_dim, pre_pooling_dim):
    """Deterministic parameter init (uniform(-1/sqrt(fan_in), 1/sqrt(fan_in)),
    mirroring nn.Linear's default scale). Weights stored as (in, out)."""
    ks = jax.random.split(key, 6)

    def lin(kw, kb, fan_in, fan_out):
        bound = 1.0 / jnp.sqrt(jnp.float32(fan_in))
        w = jax.random.uniform(kw, (fan_in, fan_out), jnp.float32, -bound, bound)
        b = jax.random.uniform(kb, (1, fan_out), jnp.float32, -bound, bound)
        return w, b

    wa, ba = lin(ks[0], ks[1], input1_dim, pre_pooling_dim)
    wt, bt = lin(ks[2], ks[3], input2_dim, pre_pooling_dim)
    wp_col, bp = lin(ks[4], ks[5], pre_pooling_dim, 1)
    wp = wp_col.T            # (1, P): used as a row so the kernel avoids a transpose
    return (wa, ba, wt, bt, wp, bp)


def ref_forward(input_1, input_2, params, mask=None):
    """Pure-JAX reference matching the PyTorch forward exactly."""
    wa, ba, wt, bt, wp, bp = params
    a = input_1 @ wa + ba[0]                         # (B, P)
    t = input_2 @ wt + bt[0]                         # (B, S, P)
    h = jnp.tanh(a[:, None, :] + t)                  # (B, S, P)
    scores = jnp.sum(h * wp[0], axis=-1) + bp[0, 0]  # (B, S)
    if mask is not None:
        scores = jnp.where(mask == 0, -1e9, scores)
    w = jax.nn.softmax(scores, axis=-1)
    pooled = jnp.sum(input_2 * w[:, :, None], axis=1)
    return pooled, w


if __name__ == "__main__":
    B, S = 2, 8                 # batch, sequence length of input_2
    D1, D2, P = 16, 32, 32      # input1_dim, input2_dim, config.pre_pooling_dim

    key = jax.random.PRNGKey(0)
    k_params, k_x1, k_x2 = jax.random.split(key, 3)

    params = init_params(k_params, D1, D2, P)
    input_1 = jax.random.normal(k_x1, (B, D1), jnp.float32)
    input_2 = jax.random.normal(k_x2, (B, S, D2), jnp.float32)

    # Tolerances are 2e-3 because the softmax denominator uses the EUP
    # approximate reciprocal (pl.reciprocal(..., approx=True)).
    ATOL = RTOL = 2e-3

    # --- no mask ---
    pooled, weights = uop_attention(input_1, input_2, params, mask=None)
    pooled = jax.block_until_ready(pooled)
    weights = jax.block_until_ready(weights)
    ref_pooled, ref_weights = ref_forward(input_1, input_2, params, mask=None)
    assert pooled.shape == (B, D2) and weights.shape == (B, S)
    assert jnp.allclose(pooled, ref_pooled, atol=ATOL, rtol=RTOL)
    assert jnp.allclose(weights, ref_weights, atol=ATOL, rtol=RTOL)

    # --- with a binary mask (last two positions of each row masked out) ---
    mask = jnp.ones((B, S), jnp.float32).at[:, -2:].set(0.0)
    pooled_m, weights_m = uop_attention(input_1, input_2, params, mask=mask)
    pooled_m = jax.block_until_ready(pooled_m)
    weights_m = jax.block_until_ready(weights_m)
    ref_pooled_m, ref_weights_m = ref_forward(input_1, input_2, params, mask=mask)
    assert jnp.allclose(pooled_m, ref_pooled_m, atol=ATOL, rtol=RTOL)
    assert jnp.allclose(weights_m, ref_weights_m, atol=ATOL, rtol=RTOL)

    print("KERNEL_OK")
</pallas_src>

<mosaic_0001>
module attributes {stable_mosaic.version = 11 : i64} {
  func.func @_uop_attention_kernel(%arg0: i32, %arg1: memref<2x16xf32, #tpu.memory_space<vmem>>, %arg2: memref<2x8x32xf32, #tpu.memory_space<vmem>>, %arg3: memref<2x8xf32, #tpu.memory_space<vmem>>, %arg4: memref<16x32xf32, #tpu.memory_space<vmem>>, %arg5: memref<1x32xf32, #tpu.memory_space<vmem>>, %arg6: memref<32x32xf32, #tpu.memory_space<vmem>>, %arg7: memref<1x32xf32, #tpu.memory_space<vmem>>, %arg8: memref<1xf32, #tpu.memory_space<smem>>, %arg9: memref<2x32xf32, #tpu.memory_space<vmem>>, %arg10: memref<2x8xf32, #tpu.memory_space<vmem>>) attributes {dimension_semantics = [#tpu.dimension_semantics<parallel>], iteration_bounds = array<i64: 1>, scalar_prefetch = 0 : i64, scratch_operands = 0 : i64, tpu.core_type = #tpu.core_type<tc>, window_params = [{transform_indices = @transform_0, window_bounds = array<i64: 2, 16>}, {transform_indices = @transform_1, window_bounds = array<i64: 2, 8, 32>}, {transform_indices = @transform_2, window_bounds = array<i64: 2, 8>}, {pipeline_mode = #tpu.pipeline_mode<synchronous>, transform_indices = @transform_3, window_bounds = array<i64: 16, 32>}, {pipeline_mode = #tpu.pipeline_mode<synchronous>, transform_indices = @transform_4, window_bounds = array<i64: 1, 32>}, {pipeline_mode = #tpu.pipeline_mode<synchronous>, transform_indices = @transform_5, window_bounds = array<i64: 32, 32>}, {pipeline_mode = #tpu.pipeline_mode<synchronous>, transform_indices = @transform_6, window_bounds = array<i64: 1, 32>}, {transform_indices = @transform_7, window_bounds = array<i64: 1>}, {transform_indices = @transform_8, window_bounds = array<i64: 2, 32>}, {transform_indices = @transform_9, window_bounds = array<i64: 2, 8>}]} {
    %c0 = arith.constant 0 : index
    %c0_0 = arith.constant 0 : index
    %0 = vector.load %arg1[%c0, %c0_0] : memref<2x16xf32, #tpu.memory_space<vmem>>, vector<2x16xf32>
    %c0_1 = arith.constant 0 : index
    %c0_2 = arith.constant 0 : index
    %c0_3 = arith.constant 0 : index
    %1 = vector.load %arg2[%c0_1, %c0_2, %c0_3] : memref<2x8x32xf32, #tpu.memory_space<vmem>>, vector<2x8x32xf32>
    %c0_4 = arith.constant 0 : index
    %c0_5 = arith.constant 0 : index
    %2 = vector.load %arg4[%c0_4, %c0_5] : memref<16x32xf32, #tpu.memory_space<vmem>>, vector<16x32xf32>
    %cst = arith.constant dense<0.000000e+00> : vector<2x32xf32>
    %3 = tpu.matmul %0, %2, %cst {dimension_numbers = #tpu.dot_dimension_numbers<[1], [0], [0], [1], [0, 0, 1, 1], [], []>} : vector<2x16xf32>, vector<16x32xf32>, vector<2x32xf32> -> vector<2x32xf32>
    %c0_6 = arith.constant 0 : index
    %c0_7 = arith.constant 0 : index
    %4 = vector.load %arg5[%c0_6, %c0_7] : memref<1x32xf32, #tpu.memory_space<vmem>>, vector<1x32xf32>
    %5 = vector.broadcast %4 : vector<1x32xf32> to vector<2x32xf32>
    %6 = arith.addf %3, %5 : vector<2x32xf32>
    %7 = vector.shape_cast %1 : vector<2x8x32xf32> to vector<16x32xf32>
    %c0_8 = arith.constant 0 : index
    %c0_9 = arith.constant 0 : index
    %8 = vector.load %arg6[%c0_8, %c0_9] : memref<32x32xf32, #tpu.memory_space<vmem>>, vector<32x32xf32>
    %cst_10 = arith.constant dense<0.000000e+00> : vector<16x32xf32>
    %9 = tpu.matmul %7, %8, %cst_10 {dimension_numbers = #tpu.dot_dimension_numbers<[1], [0], [0], [1], [0, 0, 1, 1], [], []>} : vector<16x32xf32>, vector<32x32xf32>, vector<16x32xf32> -> vector<16x32xf32>
    %10 = vector.shape_cast %9 : vector<16x32xf32> to vector<2x8x32xf32>
    %11 = vector.shape_cast %6 : vector<2x32xf32> to vector<2x1x32xf32>
    %12 = vector.broadcast %11 : vector<2x1x32xf32> to vector<2x8x32xf32>
    %13 = arith.addf %12, %10 : vector<2x8x32xf32>
    %14 = math.tanh %13 : vector<2x8x32xf32>
    %c0_11 = arith.constant 0 : index
    %c0_12 = arith.constant 0 : index
    %15 = vector.load %arg7[%c0_11, %c0_12] : memref<1x32xf32, #tpu.memory_space<vmem>>, vector<1x32xf32>
    %16 = vector.shape_cast %15 : vector<1x32xf32> to vector<1x1x32xf32>
    %17 = vector.broadcast %16 : vector<1x1x32xf32> to vector<2x8x32xf32>
    %18 = arith.mulf %14, %17 : vector<2x8x32xf32>
    %cst_13 = arith.constant dense<0.000000e+00> : vector<2x8xf32>
    %19 = vector.multi_reduction <add>, %18, %cst_13 [2] : vector<2x8x32xf32> to vector<2x8xf32>
    %c0_14 = arith.constant 0 : index
    %20 = memref.load %arg8[%c0_14] : memref<1xf32, #tpu.memory_space<smem>>
    %21 = vector.broadcast %20 : f32 to vector<2x8xf32>
    %22 = arith.addf %19, %21 : vector<2x8xf32>
    %c0_15 = arith.constant 0 : index
    %c0_16 = arith.constant 0 : index
    %23 = vector.load %arg3[%c0_15, %c0_16] : memref<2x8xf32, #tpu.memory_space<vmem>>, vector<2x8xf32>
    %cst_17 = arith.constant 0.000000e+00 : f32
    %24 = vector.broadcast %cst_17 : f32 to vector<2x8xf32>
    %25 = arith.cmpf oeq, %23, %24 : vector<2x8xf32>
    %cst_18 = arith.constant -1.000000e+09 : f32
    %26 = vector.broadcast %cst_18 : f32 to vector<2x8xf32>
    %27 = arith.select %25, %26, %22 : vector<2x8xi1>, vector<2x8xf32>
    %cst_19 = arith.constant dense<0xFF800000> : vector<2xf32>
    %28 = vector.multi_reduction <maximumf>, %27, %cst_19 [1] : vector<2x8xf32> to vector<2xf32>
    %29 = vector.shape_cast %28 : vector<2xf32> to vector<2x1xf32>
    %30 = vector.broadcast %29 : vector<2x1xf32> to vector<2x8xf32>
    %31 = arith.subf %27, %30 : vector<2x8xf32>
    %32 = math.exp %31 : vector<2x8xf32>
    %cst_20 = arith.constant dense<0.000000e+00> : vector<2xf32>
    %33 = vector.multi_reduction <add>, %32, %cst_20 [1] : vector<2x8xf32> to vector<2xf32>
    %34 = vector.shape_cast %33 : vector<2xf32> to vector<2x1xf32>
    %35 = tpu.reciprocal %34 {approx = true} : vector<2x1xf32> -> vector<2x1xf32>
    %36 = vector.broadcast %35 : vector<2x1xf32> to vector<2x8xf32>
    %37 = arith.mulf %32, %36 : vector<2x8xf32>
    %c0_21 = arith.constant 0 : index
    %c0_22 = arith.constant 0 : index
    %38 = vector.load %arg10[%c0_21, %c0_22] : memref<2x8xf32, #tpu.memory_space<vmem>>, vector<2x8xf32>
    tpu.vector_store %arg10[%c0_21, %c0_22], %37 {strides = array<i32>} : memref<2x8xf32, #tpu.memory_space<vmem>>, vector<2x8xf32>,
    %39 = vector.shape_cast %37 : vector<2x8xf32> to vector<2x1x8xf32>
    "tpu.trace_start"() <{level = 10 : i32, message = "bqs,bsd->bqd"}> : () -> ()
    %cst_23 = arith.constant dense<0.000000e+00> : vector<2x1x32xf32>
    %40 = tpu.matmul %39, %1, %cst_23 {dimension_numbers = #tpu.dot_dimension_numbers<[2], [1], [1], [2], [0, 0, 0, 1, 1, 2], [0], [0]>} : vector<2x1x8xf32>, vector<2x8x32xf32>, vector<2x1x32xf32> -> vector<2x1x32xf32>
    "tpu.trace_stop"() : () -> ()
    %41 = vector.shape_cast %40 : vector<2x1x32xf32> to vector<2x32xf32>
    %c0_24 = arith.constant 0 : index
    %c0_25 = arith.constant 0 : index
    %42 = vector.load %arg9[%c0_24, %c0_25] : memref<2x32xf32, #tpu.memory_space<vmem>>, vector<2x32xf32>
    tpu.vector_store %arg9[%c0_24, %c0_25], %41 {strides = array<i32>} : memref<2x32xf32, #tpu.memory_space<vmem>>, vector<2x32xf32>,
    return
  }
  func.func @transform_0(%arg0: i32) -> (i32, i32) {
    %c0_i32 = arith.constant 0 : i32
    %c0_i32_0 = arith.constant 0 : i32
    return %arg0, %c0_i32 : i32, i32
  }
  func.func @transform_1(%arg0: i32) -> (i32, i32, i32) {
    %c0_i32 = arith.constant 0 : i32
    %c0_i32_0 = arith.constant 0 : i32
    %c0_i32_1 = arith.constant 0 : i32
    return %arg0, %c0_i32, %c0_i32_0 : i32, i32, i32
  }
  func.func @transform_2(%arg0: i32) -> (i32, i32) {
    %c0_i32 = arith.constant 0 : i32
    %c0_i32_0 = arith.constant 0 : i32
    return %arg0, %c0_i32 : i32, i32
  }
  func.func @transform_3(%arg0: i32) -> (i32, i32) {
    %c0_i32 = arith.constant 0 : i32
    %c0_i32_0 = arith.constant 0 : i32
    %c0_i32_1 = arith.constant 0 : i32
    return %c0_i32, %c0_i32_0 : i32, i32
  }
  func.func @transform_4(%arg0: i32) -> (i32, i32) {
    %c0_i32 = arith.constant 0 : i32
    %c0_i32_0 = arith.constant 0 : i32
    %c0_i32_1 = arith.constant 0 : i32
    return %c0_i32, %c0_i32_0 : i32, i32
  }
  func.func @transform_5(%arg0: i32) -> (i32, i32) {
    %c0_i32 = arith.constant 0 : i32
    %c0_i32_0 = arith.constant 0 : i32
    %c0_i32_1 = arith.constant 0 : i32
    return %c0_i32, %c0_i32_0 : i32, i32
  }
  func.func @transform_6(%arg0: i32) -> (i32, i32) {
    %c0_i32 = arith.constant 0 : i32
    %c0_i32_0 = arith.constant 0 : i32
    %c0_i32_1 = arith.constant 0 : i32
    return %c0_i32, %c0_i32_0 : i32, i32
  }
  func.func @transform_7(%arg0: i32) -> i32 {
    %c0_i32 = arith.constant 0 : i32
    %c0_i32_0 = arith.constant 0 : i32
    return %c0_i32 : i32
  }
  func.func @transform_8(%arg0: i32) -> (i32, i32) {
    %c0_i32 = arith.constant 0 : i32
    %c0_i32_0 = arith.constant 0 : i32
    return %arg0, %c0_i32 : i32, i32
  }
  func.func @transform_9(%arg0: i32) -> (i32, i32) {
    %c0_i32 = arith.constant 0 : i32
    %c0_i32_0 = arith.constant 0 : i32
    return %arg0, %c0_i32 : i32, i32
  }
}

</mosaic_0001>

<llo_original>
// kernel: tpu_custom_call.1
$region0: #{tpu_custom_call.1}
  #allocation0 [shape = 'u32[]', space=smem, size = 0x4, offset = 0x4, fixed_abs, tag = 'smem constant byte address 0x4 - core index']
  #allocation1 [shape = 'u32[144,128]{1,0:T(1,128)}', space=vmem, size = 0x12000, scoped, tag = 'internal scratch']
  #allocation2 [shape = 'f32[1]{0:T(128)S(6)}', space=smem, size = 0x200, scoped, tag = 'scoped memory for tpu_custom_call.1']
  %s0 = inlined_call_operand.vmem [shape: f32[2,16], index: 0, kind: input, shape index: {}]
  %s1 = inlined_call_operand.hbm [shape: f32[2,8,32], index: 1, kind: input, shape index: {}]
  %s2 = inlined_call_operand.vmem [shape: f32[2,8], index: 2, kind: input, shape index: {}]
  %s3 = inlined_call_operand.hbm [shape: f32[16,32], index: 3, kind: input, shape index: {}]
  %s4 = inlined_call_operand.vmem [shape: f32[1,32], index: 4, kind: input, shape index: {}]
  %s5 = inlined_call_operand.hbm [shape: f32[32,32], index: 5, kind: input, shape index: {}]
  %s6 = inlined_call_operand.vmem [shape: f32[1,32], index: 6, kind: input, shape index: {}]
  %s7 = inlined_call_operand.<no memory space> [shape: f32[1], index: 7, kind: input, shape index: {}]
  %s8 = inlined_call_operand.hbm [shape: f32[2,32], index: 8, kind: output, shape index: {0}]
  %s9 = inlined_call_operand.hbm [shape: f32[2,8], index: 9, kind: output, shape index: {1}]
  %10 = xla_tuple %s8, %s9
  %s11 = sld [smem:[#allocation0]]
  $region62: #{tpu_custom_call.1} parent=0
    _
  %s13 = ssub.s32 1, %s11
  %s14 = scalar_select 0, %s13, %s11
  %15 = sst [smem:[#allocation2]] %s7
  $region1: #{tpu_custom_call.1} parent=0
    #allocation3 [shape = 'u8[8192]{0}', space=vmem, size = 0x2000, scoped, tag = 'input window, operand 1, single buffered']
    #allocation4 [shape = 's32[1]{0}', space=sflag, size = 0x4, scoped, tag = 'scoped memory for tpu_custom_call.1']
    #allocation5 [shape = 's32[1]{0}', space=sflag, size = 0x4, scoped, tag = 'scoped memory for tpu_custom_call.1']
    #allocation6 [shape = 'u8[8192]{0}', space=vmem, size = 0x2000, scoped, tag = 'input window, operand 3, single buffered']
    #allocation7 [shape = 's32[1]{0}', space=sflag, size = 0x4, scoped, tag = 'scoped memory for tpu_custom_call.1']
    #allocation8 [shape = 'u8[16384]{0}', space=vmem, size = 0x4000, scoped, tag = 'input window, operand 5, single buffered']
    #allocation9 [shape = 'u8[1024]{0}', space=vmem, size = 0x400, scoped, tag = 'output window, operand 0, single buffered']
    #allocation10 [shape = 'u8[1024]{0}', space=vmem, size = 0x400, scoped, tag = 'output window, operand 1, single buffered']
    #allocation11 [shape = 's32[1]{0}', space=sflag, size = 0x4, scoped, tag = 'scoped memory for tpu_custom_call.1']
    %16 = vsyncpa [#allocation4], 0
    %17 = vsyncpa [#allocation7], 0
    %18 = vsyncpa [#allocation5], 0
    %19 = vsyncpa [#allocation11], 0
    // Predicated region
    $region2: #{tpu_custom_call.1} parent=1 // pred_check
      _
    $region3: #{tpu_custom_call.1} parent=1 // pred_check_branch
      %21 = sbr.rel (0) target = $region5
    $region4: #{tpu_custom_call.1} parent=1 // pred_region
      _
    $region5: #{tpu_custom_call.1} parent=1 // pred_fallthru
      _
    // Predicated region
    $region6: #{tpu_custom_call.1} parent=1 // pred_check
      _
    $region7: #{tpu_custom_call.1} parent=1 // pred_check_branch
      %23 = sbr.rel (0) target = $region9
    $region8: #{tpu_custom_call.1} parent=1 // pred_region
      %s25 = ssub.s32 256, 256
      %26 = vsyncadd [#allocation4], %s25
      %s27 = sshll.u32 [#allocation3], 4
      %s28 = int_to_ptr.vmem [resolvable:$true] %s27
      %33 = dma.hbm_to_vmem [thread:$0]  %s1, 256, %s28, [#allocation4], 128, 128, 8
    $region9: #{tpu_custom_call.1} parent=1 // pred_fallthru
      _
    // Predicated region
    $region10: #{tpu_custom_call.1} parent=1 // pred_check
      _
    $region11: #{tpu_custom_call.1} parent=1 // pred_check_branch
      %35 = sbr.rel (0) target = $region13
    $region12: #{tpu_custom_call.1} parent=1 // pred_region
      _
    $region13: #{tpu_custom_call.1} parent=1 // pred_fallthru
      _
    // Predicated region
    $region14: #{tpu_custom_call.1} parent=1 // pred_check
      _
    $region15: #{tpu_custom_call.1} parent=1 // pred_check_branch
      %37 = sbr.rel (0) target = $region17
    $region16: #{tpu_custom_call.1} parent=1 // pred_region
      %s39 = ssub.s32 256, 256
      %40 = vsyncadd [#allocation7], %s39
      %s41 = sshll.u32 [#allocation6], 4
      %s42 = int_to_ptr.vmem [resolvable:$true] %s41
      %47 = dma.hbm_to_vmem [thread:$0]  %s3, 256, %s42, [#allocation7], 128, 128, 8
    $region17: #{tpu_custom_call.1} parent=1 // pred_fallthru
      _
    // Predicated region
    $region18: #{tpu_custom_call.1} parent=1 // pred_check
      _
    $region19: #{tpu_custom_call.1} parent=1 // pred_check_branch
      %49 = sbr.rel (0) target = $region21
    $region20: #{tpu_custom_call.1} parent=1 // pred_region
      _
    $region21: #{tpu_custom_call.1} parent=1 // pred_fallthru
      _
    // Predicated region
    $region22: #{tpu_custom_call.1} parent=1 // pred_check
      _
    $region23: #{tpu_custom_call.1} parent=1 // pred_check_branch
      %51 = sbr.rel (0) target = $region25
    $region24: #{tpu_custom_call.1} parent=1 // pred_region
      %s53 = ssub.s32 512, 512
      %54 = vsyncadd [#allocation7], %s53
      %s55 = sshll.u32 [#allocation8], 4
      %s56 = int_to_ptr.vmem [resolvable:$true] %s55
      %61 = dma.hbm_to_vmem [thread:$0]  %s5, 512, %s56, [#allocation7], 128, 128, 8
    $region25: #{tpu_custom_call.1} parent=1 // pred_fallthru
      _
    // Predicated region
    $region26: #{tpu_custom_call.1} parent=1 // pred_check
      _
    $region27: #{tpu_custom_call.1} parent=1 // pred_check_branch
      %63 = sbr.rel (0) target = $region29
    $region28: #{tpu_custom_call.1} parent=1 // pred_region
      _
    $region29: #{tpu_custom_call.1} parent=1 // pred_fallthru
      _
    // Predicated region
    $region30: #{tpu_custom_call.1} parent=1 // pred_check
      _
    $region31: #{tpu_custom_call.1} parent=1 // pred_check_branch
      %65 = sbr.rel (0) target = $region33
    $region32: #{tpu_custom_call.1} parent=1 // pred_region
      _
    $region33: #{tpu_custom_call.1} parent=1 // pred_fallthru
      _
    // Predicated region
    $region34: #{tpu_custom_call.1} parent=1 // pred_check
      _
    $region35: #{tpu_custom_call.1} parent=1 // pred_check_branch
      %67 = sbr.rel (0) target = $region37
    $region36: #{tpu_custom_call.1} parent=1 // pred_region
      %68 = dma.done [#allocation4], 256
    $region37: #{tpu_custom_call.1} parent=1 // pred_fallthru
      _
    // Predicated region
    $region38: #{tpu_custom_call.1} parent=1 // pred_check
      _
    $region39: #{tpu_custom_call.1} parent=1 // pred_check_branch
      %70 = sbr.rel (0) target = $region41
    $region40: #{tpu_custom_call.1} parent=1 // pred_region
      %71 = dma.done [#allocation7], 256
    $region41: #{tpu_custom_call.1} parent=1 // pred_fallthru
      _
    // Predicated region
    $region42: #{tpu_custom_call.1} parent=1 // pred_check
      _
    $region43: #{tpu_custom_call.1} parent=1 // pred_check_branch
      %73 = sbr.rel (0) target = $region45
    $region44: #{tpu_custom_call.1} parent=1 // pred_region
      %74 = dma.done [#allocation7], 512
    $region45: #{tpu_custom_call.1} parent=1 // pred_fallthru
      _
    %v75 = vld [vmem:[%s0] sm:$0x3]
    %v76 = vld [vmem:[#allocation3] sm:$0xff]
    %v77 = vld [vmem:[#allocation3 + $0x8] sm:$0xff]
    %v78 = vld [vmem:[#allocation6] sm:$0xff]
    %v79 = vld [vmem:[#allocation6 + $0x8] sm:$0xff]
    %v80 = vld [vmem:[%s4] sm:$0x1]
    %v82 = vlaneseq
    %v83 = vshrl.u32 %v82, 7
    %v84 = vsub.s32 0, %v83
    %v85 = vrot.slane %v80, %v84
    %vm87 = vcmask 130048
    %v89 = vsel %vm87, %v75, 0
    %91 = vmatprep.subr.mxu0 0.0
    %92 = vmatpush1.msra.mxu0 %v78
    %93 = vmatprep.subr.mxu0 0.0
    %94 = vmatpush1.msra.mxu0 %v79
    %95 = vmatprep.subr.mxu0 0.0
    %96 = vmatpush1.msra.mxu0 0.0
    %97 = vmatprep.subr.mxu0 0.0
    %98 = vmatpush1.msra.mxu0 0.0
    %99 = vmatprep.subr.mxu0 0.0
    %100 = vmatpush1.msra.mxu0 0.0
    %101 = vmatprep.subr.mxu0 0.0
    %102 = vmatpush1.msra.mxu0 0.0
    %103 = vmatprep.subr.mxu0 0.0
    %104 = vmatpush1.msra.mxu0 0.0
    %105 = vmatprep.subr.mxu0 0.0
    %106 = vmatpush1.msra.mxu0 0.0
    %107 = vmatprep.subr.mxu0 0.0
    %108 = vmatpush1.msra.mxu0 0.0
    %109 = vmatprep.subr.mxu0 0.0
    %110 = vmatpush1.msra.mxu0 0.0
    %111 = vmatprep.subr.mxu0 0.0
    %112 = vmatpush1.msra.mxu0 0.0
    %113 = vmatprep.subr.mxu0 0.0
    %114 = vmatpush1.msra.mxu0 0.0
    %115 = vmatprep.subr.mxu0 0.0
    %116 = vmatpush1.msra.mxu0 0.0
    %117 = vmatprep.subr.mxu0 0.0
    %118 = vmatpush1.msra.mxu0 0.0
    %119 = vmatprep.subr.mxu0 0.0
    %120 = vmatpush1.msra.mxu0 0.0
    %121 = vmatprep.subr.mxu0 0.0
    %122 = vmatpush1.msra.mxu0 0.0
    %123 = vmatprep.subr.mxu0 0.0
    %124 = vmatpush1.msra.mxu0 0.0
    %125 = vmatprep.subr.mxu0 0.0
    %126 = vmatpush1.msra.mxu0 0.0
    %127 = vmatprep.subr.mxu0 0.0
    %128 = vmatpush1.msra.mxu0 0.0
    %129 = vmatprep.subr.mxu0 0.0
    %130 = vmatpush1.msra.mxu0 0.0
    %131 = vmatprep.subr.mxu0 0.0
    %132 = vmatpush1.msra.mxu0 0.0
    %133 = vmatprep.subr.mxu0 0.0
    %134 = vmatpush1.msra.mxu0 0.0
    %135 = vmatprep.subr.mxu0 0.0
    %136 = vmatpush1.msra.mxu0 0.0
    %137 = vmatprep.subr.mxu0 0.0
    %138 = vmatpush1.msra.mxu0 0.0
    %139 = vmatprep.subr.mxu0 0.0
    %140 = vmatpush1.msra.mxu0 0.0
    %141 = vmatprep.subr.mxu0 0.0
    %142 = vmatpush1.msra.mxu0 0.0
    %143 = vmatprep.subr.mxu0 0.0
    %144 = vmatpush1.msra.mxu0 0.0
    %145 = vmatprep.subr.mxu0 0.0
    %146 = vmatpush1.msra.mxu0 0.0
    %147 = vmatprep.subr.mxu0 0.0
    %148 = vmatpush1.msra.mxu0 0.0
    %149 = vmatprep.subr.mxu0 0.0
    %150 = vmatpush1.msra.mxu0 0.0
    %151 = vmatprep.subr.mxu0 0.0
    %152 = vmatpush1.msra.mxu0 0.0
    %153 = vmatprep.subr.mxu0 0.0
    %154 = vmatpush1.msra.mxu0 0.0
    %155 = vmatprep.mubr.f32.mxu0 0.0
    %156 = vmatmul.mubr.f32.gmra.mrb[0].mxu0 %v89
    %v157 = vpop.f32.mrb[0].mxu0
    %v158 = vadd.f32 %v85, %v157
    %v159 = vpop.f32.mrb[0].mxu0
    %160 = vdwg.mxu0
    %v161 = vld [vmem:[#allocation8] sm:$0xff]
    %v162 = vld [vmem:[#allocation8 + $0x8] sm:$0xff]
    %v163 = vld [vmem:[#allocation8 + $0x10] sm:$0xff]
    %v164 = vld [vmem:[#allocation8 + $0x18] sm:$0xff]
    %vm165 = vcmask 261120
    %v167 = vsel %vm165, %v76, 0
    %v170 = vsel %vm165, %v77, 0
    %172 = vmatprep.subr.mxu0 0.0
    %173 = vmatpush1.msra.mxu0 %v161
    %174 = vmatprep.subr.mxu0 0.0
    %175 = vmatpush1.msra.mxu0 %v162
    %176 = vmatprep.subr.mxu0 0.0
    %177 = vmatpush1.msra.mxu0 %v163
    %178 = vmatprep.subr.mxu0 0.0
    %179 = vmatpush1.msra.mxu0 %v164
    %180 = vmatprep.subr.mxu0 0.0
    %181 = vmatpush1.msra.mxu0 0.0
    %182 = vmatprep.subr.mxu0 0.0
    %183 = vmatpush1.msra.mxu0 0.0
    %184 = vmatprep.subr.mxu0 0.0
    %185 = vmatpush1.msra.mxu0 0.0
    %186 = vmatprep.subr.mxu0 0.0
    %187 = vmatpush1.msra.mxu0 0.0
    %188 = vmatprep.subr.mxu0 0.0
    %189 = vmatpush1.msra.mxu0 0.0
    %190 = vmatprep.subr.mxu0 0.0
    %191 = vmatpush1.msra.mxu0 0.0
    %192 = vmatprep.subr.mxu0 0.0
    %193 = vmatpush1.msra.mxu0 0.0
    %194 = vmatprep.subr.mxu0 0.0
    %195 = vmatpush1.msra.mxu0 0.0
    %196 = vmatprep.subr.mxu0 0.0
    %197 = vmatpush1.msra.mxu0 0.0
    %198 = vmatprep.subr.mxu0 0.0
    %199 = vmatpush1.msra.mxu0 0.0
    %200 = vmatprep.subr.mxu0 0.0
    %201 = vmatpush1.msra.mxu0 0.0
    %202 = vmatprep.subr.mxu0 0.0
    %203 = vmatpush1.msra.mxu0 0.0
    %204 = vmatprep.subr.mxu0 0.0
    %205 = vmatpush1.msra.mxu0 0.0
    %206 = vmatprep.subr.mxu0 0.0
    %207 = vmatpush1.msra.mxu0 0.0
    %208 = vmatprep.subr.mxu0 0.0
    %209 = vmatpush1.msra.mxu0 0.0
    %210 = vmatprep.subr.mxu0 0.0
    %211 = vmatpush1.msra.mxu0 0.0
    %212 = vmatprep.subr.mxu0 0.0
    %213 = vmatpush1.msra.mxu0 0.0
    %214 = vmatprep.subr.mxu0 0.0
    %215 = vmatpush1.msra.mxu0 0.0
    %216 = vmatprep.subr.mxu0 0.0
    %217 = vmatpush1.msra.mxu0 0.0
    %218 = vmatprep.subr.mxu0 0.0
    %219 = vmatpush1.msra.mxu0 0.0
    %220 = vmatprep.subr.mxu0 0.0
    %221 = vmatpush1.msra.mxu0 0.0
    %222 = vmatprep.subr.mxu0 0.0
    %223 = vmatpush1.msra.mxu0 0.0
    %224 = vmatprep.subr.mxu0 0.0
    %225 = vmatpush1.msra.mxu0 0.0
    %226 = vmatprep.subr.mxu0 0.0
    %227 = vmatpush1.msra.mxu0 0.0
    %228 = vmatprep.subr.mxu0 0.0
    %229 = vmatpush1.msra.mxu0 0.0
    %230 = vmatprep.subr.mxu0 0.0
    %231 = vmatpush1.msra.mxu0 0.0
    %232 = vmatprep.subr.mxu0 0.0
    %233 = vmatpush1.msra.mxu0 0.0
    %234 = vmatprep.subr.mxu0 0.0
    %235 = vmatpush1.msra.mxu0 0.0
    %236 = vmatprep.mubr.f32.mxu0 0.0
    %237 = vmatmul.mubr.f32.gmra.mrb[0].mxu0 %v167
    %v238 = vpop.f32.mrb[0].mxu0
    %v239 = vadd.f32 0.0, %v238
    %v240 = vpop.f32.mrb[0].mxu0
    %241 = vmatprep.mubr.f32.mxu0 0.0
    %242 = vmatmul.mubr.f32.gmra.mrb[0].mxu0 %v170
    %v243 = vpop.f32.mrb[0].mxu0
    %v244 = vadd.f32 0.0, %v243
    %v245 = vpop.f32.mrb[0].mxu0
    %246 = vdwg.mxu0
    %v249 = vunpack.c.l.s4 1966171168
    %v250 = vunpack.c.0.s8 %v249
    %v251 = vlaneseq
    %v252 = vshrl.u32 %v251, 7
    %v253 = vsub.s32 %v250, %v252
    %v254 = vrot.slane %v158, %v253
    %v255 = vcombine.high %v254, %v254
    %v257 = vunpack.c.l.s4 1966171168
    %v258 = vunpack.c.0.s8 %v257
    %v259 = vlaneseq
    %v260 = vshrl.u32 %v259, 7
    %v261 = vsub.s32 %v258, %v260
    %v262 = vrot.slane %v254, %v261
    %v264 = vunpack.c.l.s4 1966171168
    %v265 = vunpack.c.0.s8 %v264
    %v266 = vlaneseq
    %v267 = vshrl.u32 %v266, 7
    %v268 = vsub.s32 %v265, %v267
    %v269 = vrot.slane %v255, %v268
    %v270 = vlaneseq
    %v271 = vshrl.u32 %v270, 7
    %v272 = vsub.s32 0, %v271
    %v273 = vrot.slane %v262, %v272
    %v274 = vlaneseq
    %v275 = vshrl.u32 %v274, 7
    %v276 = vsub.s32 0, %v275
    %v277 = vrot.slane %v269, %v276
    %v280 = vadd.f32 %v273, %v239
    %v281 = vadd.f32 %v277, %v244
    %v282 = vtanh.pop %v280
    %v283 = vtanh.pop %v281
    %v284 = vld [vmem:[%s6] sm:$0x1]
    %v286 = vlaneseq
    %v287 = vshrl.u32 %v286, 7
    %v288 = vsub.s32 0, %v287
    %v289 = vrot.slane %v284, %v288
    %v291 = vmul.f32 %v282, %v289
    %v292 = vmul.f32 %v283, %v289
    %v293 = vsel %vm165, %v291, 0.0
    %294 = vadd.xlane.f32.xlu0 %v293
    %v295 = vpop.xlane.xlu0 %294
    %v296 = vsel %vm165, %v292, 0.0
    %297 = vadd.xlane.f32.xlu0 %v296
    %v298 = vpop.xlane.xlu0 %297
    %s299 = sld [smem:[#allocation2]]
    %v300 = vstv %s299
    %v301 = vadd.f32 %v295, %v300
    %v302 = vadd.f32 %v298, %v300
    %v303 = vld [vmem:[%s2] sm:$0x3]
    %vm304 = vcmp.eq.f32.partialorder %v303, 0.0
    %v307 = vlaneseq
    %v308 = vand.u32 %v307, 127
    %v309 = vlaneseq
    %v310 = vshrl.u32 %v309, 7
    %v311 = vsub.s32 %v308, %v310
    %v312 = vrot.slane %v301, %v311
    %v313 = vlaneseq
    %v314 = vshrl.u32 %v313, 7
    %v315 = vsub.s32 %v308, %v314
    %v316 = vrot.slane %v302, %v315
    %vm317 = vcmask 1041409
    %v318 = vsel %vm317, %v316, %v312
    %v320 = vsel %vm304, -1e+09, %v318
    %vm321 = vcmask 58368
    %v322 = vsel %vm321, %v320, -inf
    %323 = vmax.xlane.f32.xlu0 %v322
    %v324 = vpop.xlane.xlu0 %323
    %v325 = vsub.f32 %v320, %v324
    %v326 = vmul.f32 %v325, 1.442695
    %v327 = vpow.pop %v326
    %v328 = vsel %vm321, %v327, 0.0
    %329 = vadd.xlane.f32.xlu0 %v328
    %v330 = vpop.xlane.xlu0 %329
    %v331 = vrcp.pop %v330
    %v332 = vmul.f32 %v327, %v331
    %333 = vst.msk [vmem:[#allocation10] sm:$0x3] %vm321, %v332
    %v336 = vunpack.c.l.s4 1966171168
    %v337 = vunpack.c.0.s8 %v336
    %v338 = vlaneseq
    %v339 = vshrl.u32 %v338, 7
    %v340 = vsub.s32 %v337, %v339
    %v341 = vrot.slane %v332, %v340
    %v342 = vcombine.high %v341, %v341
    %v344 = vunpack.c.l.s4 1966171168
    %v345 = vunpack.c.0.s8 %v344
    %v346 = vlaneseq
    %v347 = vshrl.u32 %v346, 7
    %v348 = vsub.s32 %v345, %v347
    %v349 = vrot.slane %v341, %v348
    %v351 = vunpack.c.l.s4 1966171168
    %v352 = vunpack.c.0.s8 %v351
    %v353 = vlaneseq
    %v354 = vshrl.u32 %v353, 7
    %v355 = vsub.s32 %v352, %v354
    %v356 = vrot.slane %v342, %v355
    %vm357 = vcmask 64512
    %v358 = vsel %vm357, %v349, 0
    %360 = vmatprep.subr.mxu0 0.0
    %361 = vmatpush1.msra.mxu0 %v76
    %362 = vmatprep.subr.mxu0 0.0
    %363 = vmatpush1.msra.mxu0 0.0
    %364 = vmatprep.subr.mxu0 0.0
    %365 = vmatpush1.msra.mxu0 0.0
    %366 = vmatprep.subr.mxu0 0.0
    %367 = vmatpush1.msra.mxu0 0.0
    %368 = vmatprep.subr.mxu0 0.0
    %369 = vmatpush1.msra.mxu0 0.0
    %370 = vmatprep.subr.mxu0 0.0
    %371 = vmatpush1.msra.mxu0 0.0
    %372 = vmatprep.subr.mxu0 0.0
    %373 = vmatpush1.msra.mxu0 0.0
    %374 = vmatprep.subr.mxu0 0.0
    %375 = vmatpush1.msra.mxu0 0.0
    %376 = vmatprep.subr.mxu0 0.0
    %377 = vmatpush1.msra.mxu0 0.0
    %378 = vmatprep.subr.mxu0 0.0
    %379 = vmatpush1.msra.mxu0 0.0
    %380 = vmatprep.subr.mxu0 0.0
    %381 = vmatpush1.msra.mxu0 0.0
    %382 = vmatprep.subr.mxu0 0.0
    %383 = vmatpush1.msra.mxu0 0.0
    %384 = vmatprep.subr.mxu0 0.0
    %385 = vmatpush1.msra.mxu0 0.0
    %386 = vmatprep.subr.mxu0 0.0
    %387 = vmatpush1.msra.mxu0 0.0
    %388 = vmatprep.subr.mxu0 0.0
    %389 = vmatpush1.msra.mxu0 0.0
    %390 = vmatprep.subr.mxu0 0.0
    %391 = vmatpush1.msra.mxu0 0.0
    %392 = vmatprep.subr.mxu0 0.0
    %393 = vmatpush1.msra.mxu0 0.0
    %394 = vmatprep.subr.mxu0 0.0
    %395 = vmatpush1.msra.mxu0 0.0
    %396 = vmatprep.subr.mxu0 0.0
    %397 = vmatpush1.msra.mxu0 0.0
    %398 = vmatprep.subr.mxu0 0.0
    %399 = vmatpush1.msra.mxu0 0.0
    %400 = vmatprep.subr.mxu0 0.0
    %401 = vmatpush1.msra.mxu0 0.0
    %402 = vmatprep.subr.mxu0 0.0
    %403 = vmatpush1.msra.mxu0 0.0
    %404 = vmatprep.subr.mxu0 0.0
    %405 = vmatpush1.msra.mxu0 0.0
    %406 = vmatprep.subr.mxu0 0.0
    %407 = vmatpush1.msra.mxu0 0.0
    %408 = vmatprep.subr.mxu0 0.0
    %409 = vmatpush1.msra.mxu0 0.0
    %410 = vmatprep.subr.mxu0 0.0
    %411 = vmatpush1.msra.mxu0 0.0
    %412 = vmatprep.subr.mxu0 0.0
    %413 = vmatpush1.msra.mxu0 0.0
    %414 = vmatprep.subr.mxu0 0.0
    %415 = vmatpush1.msra.mxu0 0.0
    %416 = vmatprep.subr.mxu0 0.0
    %417 = vmatpush1.msra.mxu0 0.0
    %418 = vmatprep.subr.mxu0 0.0
    %419 = vmatpush1.msra.mxu0 0.0
    %420 = vmatprep.subr.mxu0 0.0
    %421 = vmatpush1.msra.mxu0 0.0
    %422 = vmatprep.subr.mxu0 0.0
    %423 = vmatpush1.msra.mxu0 0.0
    %424 = vmatprep.mubr.f32.mxu0 0.0
    %425 = vmatmul.mubr.f32.gmra.mrb[0].mxu0 %v358
    %v426 = vpop.f32.mrb[0].mxu0
    %v427 = vadd.f32 0.0, %v426
    %v428 = vpop.f32.mrb[0].mxu0
    %429 = vdwg.mxu0
    %v430 = vsel %vm357, %v356, 0
    %432 = vmatprep.subr.mxu0 0.0
    %433 = vmatpush1.msra.mxu0 %v77
    %434 = vmatprep.subr.mxu0 0.0
    %435 = vmatpush1.msra.mxu0 0.0
    %436 = vmatprep.subr.mxu0 0.0
    %437 = vmatpush1.msra.mxu0 0.0
    %438 = vmatprep.subr.mxu0 0.0
    %439 = vmatpush1.msra.mxu0 0.0
    %440 = vmatprep.subr.mxu0 0.0
    %441 = vmatpush1.msra.mxu0 0.0
    %442 = vmatprep.subr.mxu0 0.0
    %443 = vmatpush1.msra.mxu0 0.0
    %444 = vmatprep.subr.mxu0 0.0
    %445 = vmatpush1.msra.mxu0 0.0
    %446 = vmatprep.subr.mxu0 0.0
    %447 = vmatpush1.msra.mxu0 0.0
    %448 = vmatprep.subr.mxu0 0.0
    %449 = vmatpush1.msra.mxu0 0.0
    %450 = vmatprep.subr.mxu0 0.0
    %451 = vmatpush1.msra.mxu0 0.0
    %452 = vmatprep.subr.mxu0 0.0
    %453 = vmatpush1.msra.mxu0 0.0
    %454 = vmatprep.subr.mxu0 0.0
    %455 = vmatpush1.msra.mxu0 0.0
    %456 = vmatprep.subr.mxu0 0.0
    %457 = vmatpush1.msra.mxu0 0.0
    %458 = vmatprep.subr.mxu0 0.0
    %459 = vmatpush1.msra.mxu0 0.0
    %460 = vmatprep.subr.mxu0 0.0
    %461 = vmatpush1.msra.mxu0 0.0
    %462 = vmatprep.subr.mxu0 0.0
    %463 = vmatpush1.msra.mxu0 0.0
    %464 = vmatprep.subr.mxu0 0.0
    %465 = vmatpush1.msra.mxu0 0.0
    %466 = vmatprep.subr.mxu0 0.0
    %467 = vmatpush1.msra.mxu0 0.0
    %468 = vmatprep.subr.mxu0 0.0
    %469 = vmatpush1.msra.mxu0 0.0
    %470 = vmatprep.subr.mxu0 0.0
    %471 = vmatpush1.msra.mxu0 0.0
    %472 = vmatprep.subr.mxu0 0.0
    %473 = vmatpush1.msra.mxu0 0.0
    %474 = vmatprep.subr.mxu0 0.0
    %475 = vmatpush1.msra.mxu0 0.0
    %476 = vmatprep.subr.mxu0 0.0
    %477 = vmatpush1.msra.mxu0 0.0
    %478 = vmatprep.subr.mxu0 0.0
    %479 = vmatpush1.msra.mxu0 0.0
    %480 = vmatprep.subr.mxu0 0.0
    %481 = vmatpush1.msra.mxu0 0.0
    %482 = vmatprep.subr.mxu0 0.0
    %483 = vmatpush1.msra.mxu0 0.0
    %484 = vmatprep.subr.mxu0 0.0
    %485 = vmatpush1.msra.mxu0 0.0
    %486 = vmatprep.subr.mxu0 0.0
    %487 = vmatpush1.msra.mxu0 0.0
    %488 = vmatprep.subr.mxu0 0.0
    %489 = vmatpush1.msra.mxu0 0.0
    %490 = vmatprep.subr.mxu0 0.0
    %491 = vmatpush1.msra.mxu0 0.0
    %492 = vmatprep.subr.mxu0 0.0
    %493 = vmatpush1.msra.mxu0 0.0
    %494 = vmatprep.subr.mxu0 0.0
    %495 = vmatpush1.msra.mxu0 0.0
    %496 = vmatprep.mubr.f32.mxu0 0.0
    %497 = vmatmul.mubr.f32.gmra.mrb[0].mxu0 %v430
    %v498 = vpop.f32.mrb[0].mxu0
    %v499 = vadd.f32 0.0, %v498
    %v500 = vpop.f32.mrb[0].mxu0
    %501 = vdwg.mxu0
    %v504 = vrot.slane %v499, 7
    %v505 = vsel %vm317, %v504, %v427
    %vm507 = vcmask 254976
    %508 = vst.msk [vmem:[#allocation9] sm:$0x3] %vm507, %v505
    // Predicated region
    $region46: #{tpu_custom_call.1} parent=1 // pred_check
      _
    $region47: #{tpu_custom_call.1} parent=1 // pred_check_branch
      %510 = sbr.rel (0) target = $region49
    $region48: #{tpu_custom_call.1} parent=1 // pred_region
      %s512 = ssub.s32 32, 32
      %513 = vsyncadd [#allocation5], %s512
      %s515 = sshll.u32 [#allocation9], 4
      %s516 = int_to_ptr.vmem [resolvable:$true] %s515
      %518 = dma.vmem_to_hbm [thread:$0]  %s516, 32, %s8, [#allocation5]
    $region49: #{tpu_custom_call.1} parent=1 // pred_fallthru
      _
    // Predicated region
    $region50: #{tpu_custom_call.1} parent=1 // pred_check
      _
    $region51: #{tpu_custom_call.1} parent=1 // pred_check_branch
      %520 = sbr.rel (0) target = $region53
    $region52: #{tpu_custom_call.1} parent=1 // pred_region
      %s522 = ssub.s32 32, 32
      %523 = vsyncadd [#allocation11], %s522
      %s525 = sshll.u32 [#allocation10], 4
      %s526 = int_to_ptr.vmem [resolvable:$true] %s525
      %528 = dma.vmem_to_hbm [thread:$0]  %s526, 32, %s9, [#allocation11]
    $region53: #{tpu_custom_call.1} parent=1 // pred_fallthru
      _
    // Predicated region
    $region54: #{tpu_custom_call.1} parent=1 // pred_check
      _
    $region55: #{tpu_custom_call.1} parent=1 // pred_check_branch
      %530 = sbr.rel (0) target = $region57
    $region56: #{tpu_custom_call.1} parent=1 // pred_region
      %531 = dma.done [#allocation5], 32
    $region57: #{tpu_custom_call.1} parent=1 // pred_fallthru
      _
    // Predicated region
    $region58: #{tpu_custom_call.1} parent=1 // pred_check
      _
    $region59: #{tpu_custom_call.1} parent=1 // pred_check_branch
      %533 = sbr.rel (0) target = $region61
    $region60: #{tpu_custom_call.1} parent=1 // pred_region
      %534 = dma.done [#allocation11], 32
    $region61: #{tpu_custom_call.1} parent=1 // pred_fallthru
      _
    %535 = vsyncpa [#allocation4], 1
    %536 = vsyncpa [#allocation7], 1
    %537 = vsyncpa [#allocation5], 1
    %538 = vsyncpa [#allocation11], 1

</llo_original>
